<compile_context>
chip_gen: v7x
topology: tpu7x:2x2x1
jax: 0.10.0
libtpu: 0.0.40
codegen_flags: <defaults>
</compile_context>

<pallas_src>
import functools

import jax
import jax.numpy as jnp
from jax.experimental import pallas as pl
from jax.experimental.pallas import tpu as pltpu


# Lane-dense layout constants (f32): lane dim multiple of 128, sublane
# (row-tile) dim multiple of 8, block ~1 MiB = 512 * 512 * 4 B.
_LANE = 512
_MAX_TILE_ROWS = 512


def _round_up(x: int, m: int) -> int:
    return ((x + m - 1) // m) * m


def _feature_extractor_kernel(x_ref, o_ref):
    # Abstract base class defines no transformation; pass features through.
    # (Concrete subclasses put their conv/matmul/reduction hot path here.)
    o_ref[...] = x_ref[...]


@functools.partial(jax.jit, static_argnames=())
def feature_extractor_forward(x_nchw):
    """Pallas stand-in for FeatureExtractor.forward (abstract in reference)."""
    orig_shape = x_nchw.shape
    total = 1
    for d in orig_shape:
        total *= d

    # Lane-dense flatten: (rows, _LANE) with rows padded so every tile is a
    # full (TILE_R, _LANE) block that satisfies the (8, 128) f32 tiling rule.
    rows = pl.cdiv(total, _LANE)
    tile_r = min(_MAX_TILE_ROWS, _round_up(rows, 8))
    padded_rows = _round_up(rows, tile_r)
    padded_total = padded_rows * _LANE

    flat = x_nchw.reshape(-1)
    if padded_total != total:
        flat = jnp.pad(flat, (0, padded_total - total))
    x2d = flat.reshape(padded_rows, _LANE)

    grid = (padded_rows // tile_r,)

    out2d = pl.pallas_call(
        _feature_extractor_kernel,
        out_shape=jax.ShapeDtypeStruct(x2d.shape, x2d.dtype),
        grid_spec=pltpu.PrefetchScalarGridSpec(
            num_scalar_prefetch=0,
            grid=grid,
            in_specs=[pl.BlockSpec((tile_r, _LANE), lambda i: (i, 0))],
            out_specs=pl.BlockSpec((tile_r, _LANE), lambda i: (i, 0)),
        ),
        compiler_params=pltpu.CompilerParams(
            # Independent row tiles: v7x can shard steps over its 2 TCs.
            dimension_semantics=("parallel",),
            # Explicit, generation-safe scoped-VMEM budget with headroom
            # (blocks are ~1 MiB; double-buffered in+out ~= 4 MiB).
            vmem_limit_bytes=32 * 1024 * 1024,
        ),
        # Identity pass-through: let the output alias the input slab so the
        # placeholder path does not pay a second HBM allocation.
        input_output_aliases={0: 0},
    )(x2d)

    return out2d.reshape(-1)[:total].reshape(orig_shape)


# TODO(synk): extract_features / make_predictions are likewise abstract in the
# reference module (raise NotImplementedError); no Pallas kernels are emitted
# for them.


if __name__ == "__main__":
    key = jax.random.PRNGKey(0)
    x = jax.random.normal(key, (2, 4, 16, 16), dtype=jnp.float32)  # NCHW

    out = feature_extractor_forward(x)
    jax.block_until_ready(out)

    # Sanity: identity pass-through of the abstract forward placeholder.
    assert out.shape == x.shape
    assert out.dtype == x.dtype
    assert jnp.allclose(out, x)

    print("KERNEL_OK")
</pallas_src>

<mosaic_0001>
module attributes {stable_mosaic.version = 11 : i64} {
  func.func @_feature_extractor_kernel(%arg0: i32, %arg1: memref<8x512xf32, #tpu.memory_space<vmem>>, %arg2: memref<8x512xf32, #tpu.memory_space<vmem>>) attributes {dimension_semantics = [#tpu.dimension_semantics<parallel>], iteration_bounds = array<i64: 1>, scalar_prefetch = 0 : i64, scratch_operands = 0 : i64, tpu.core_type = #tpu.core_type<tc>, window_params = [{transform_indices = @transform_0, window_bounds = array<i64: 8, 512>}, {transform_indices = @transform_1, window_bounds = array<i64: 8, 512>}]} {
    %c0 = arith.constant 0 : index
    %c0_0 = arith.constant 0 : index
    %0 = vector.load %arg1[%c0, %c0_0] : memref<8x512xf32, #tpu.memory_space<vmem>>, vector<8x512xf32>
    %c0_1 = arith.constant 0 : index
    %c0_2 = arith.constant 0 : index
    %1 = vector.load %arg2[%c0_1, %c0_2] : memref<8x512xf32, #tpu.memory_space<vmem>>, vector<8x512xf32>
    tpu.vector_store %arg2[%c0_1, %c0_2], %0 {strides = array<i32>} : memref<8x512xf32, #tpu.memory_space<vmem>>, vector<8x512xf32>,
    return
  }
  func.func @transform_0(%arg0: i32) -> (i32, i32) {
    %c0_i32 = arith.constant 0 : i32
    %c0_i32_0 = arith.constant 0 : i32
    return %arg0, %c0_i32 : i32, i32
  }
  func.func @transform_1(%arg0: i32) -> (i32, i32) {
    %c0_i32 = arith.constant 0 : i32
    %c0_i32_0 = arith.constant 0 : i32
    return %arg0, %c0_i32 : i32, i32
  }
}

</mosaic_0001>

<llo_original>
// kernel: feature_extractor_forward.1
$region0: #{feature_extractor_forward.1}
  #allocation0 [shape = 'u32[]', space=smem, size = 0x4, offset = 0x4, fixed_abs, tag = 'smem constant byte address 0x4 - core index']
  #allocation1 [shape = 'u32[144,128]{1,0:T(1,128)}', space=vmem, size = 0x12000, scoped, tag = 'internal scratch']
  %s0 = inlined_call_operand.vmem [shape: f32[8,512], index: 0, kind: input, shape index: {}, may-alias: {0,1}]
  %s1 = inlined_call_operand.vmem [shape: f32[8,512], index: 1, kind: output, shape index: {}, may-alias: {0,1}]
  %s2 = sld [smem:[#allocation0]]
  $region14: #{feature_extractor_forward.1} parent=0
    _
  %s4 = ssub.s32 1, %s2
  %s5 = scalar_select 0, %s4, %s2
  // Predicated region
  $region2: #{feature_extractor_forward.1} parent=0 // pred_check
    _
  $region3: #{feature_extractor_forward.1} parent=0 // pred_check_branch
    %7 = sbr.rel (0) target = $region5
  $region4: #{feature_extractor_forward.1} parent=0 // pred_region
    _
  $region5: #{feature_extractor_forward.1} parent=0 // pred_fallthru
    _
  %v8 = vld [vmem:[%s0] sm:$0xff]
  %v9 = vld [vmem:[%s0 + $0x8] sm:$0xff]
  %v10 = vld [vmem:[%s0 + $0x10] sm:$0xff]
  %v11 = vld [vmem:[%s0 + $0x18] sm:$0xff]
  %12 = vst [vmem:[%s1] sm:$0xff] %v8
  %13 = vst [vmem:[%s1 + $0x8] sm:$0xff] %v9
  %14 = vst [vmem:[%s1 + $0x10] sm:$0xff] %v10
  %15 = vst [vmem:[%s1 + $0x18] sm:$0xff] %v11
  // Predicated region
  $region6: #{feature_extractor_forward.1} parent=0 // pred_check
    _
  $region7: #{feature_extractor_forward.1} parent=0 // pred_check_branch
    %17 = sbr.rel (0) target = $region9
  $region8: #{feature_extractor_forward.1} parent=0 // pred_region
    _
  $region9: #{feature_extractor_forward.1} parent=0 // pred_fallthru
    _
  // Predicated region
  $region10: #{feature_extractor_forward.1} parent=0 // pred_check
    _
  $region11: #{feature_extractor_forward.1} parent=0 // pred_check_branch
    %19 = sbr.rel (0) target = $region13
  $region12: #{feature_extractor_forward.1} parent=0 // pred_region
    _
  $region13: #{feature_extractor_forward.1} parent=0 // pred_fallthru
    _

</llo_original>
